<compile_context>
chip_gen: v7x
topology: tpu7x:2x2x1
jax: 0.10.0
libtpu: 0.0.40
codegen_flags: <defaults>
</compile_context>

<pallas_src>
import functools
import math

import numpy as np

import jax
import jax.numpy as jnp
from jax import lax
from jax.experimental import pallas as pl
from jax.experimental.pallas import tpu as pltpu


_VMEM_LIMIT = 32 * 1024 * 1024  # explicit scoped-VMEM limit (safe on v5e/v6e/v7x)


# ----------------------------------------------------------------------------
# Kernel 1: spatial mean over H*W (channel-last, C on the lane axis).
# ----------------------------------------------------------------------------
def _spatial_mean_kernel(x_ref, o_ref):
    x = x_ref[0].astype(jnp.float32)                       # (T, HW, C)
    o_ref[...] = jnp.mean(x, axis=1)[None].astype(o_ref.dtype)


def spatial_mean(x):
    """x: (N, T, HW, C) channel-last -> (N, T, C)."""
    N, T, HW, C = x.shape
    return pl.pallas_call(
        _spatial_mean_kernel,
        out_shape=jax.ShapeDtypeStruct((N, T, C), x.dtype),
        grid=(N,),
        in_specs=[pl.BlockSpec((1, T, HW, C), lambda i: (i, 0, 0, 0))],
        out_specs=pl.BlockSpec((1, T, C), lambda i: (i, 0, 0)),
        compiler_params=pltpu.CompilerParams(
            dimension_semantics=("parallel",),
            vmem_limit_bytes=_VMEM_LIMIT),
    )(x)


# ----------------------------------------------------------------------------
# Kernel 2: 1x1 Conv1d as ONE batched channel matmul (+ bias + activation).
#   x (..., Cin) is flattened to (M, Cin); the grid tiles Cout so the output
#   stays lane-dense and large projections get a parallel grid axis.
# ----------------------------------------------------------------------------
def _dense_kernel(x_ref, w_ref, b_ref, o_ref, *, act):
    y = jnp.dot(x_ref[...], w_ref[...], preferred_element_type=jnp.float32)
    y = y + b_ref[...]
    if act == "relu":
        y = jnp.maximum(y, 0.0)
    elif act == "tanh":
        y = jnp.tanh(y)
    o_ref[...] = y.astype(o_ref.dtype)


def dense(x, w, b=None, act=None, compute_dtype=None):
    """Channel-last 1x1 conv: x (..., Cin) @ w (Cin, Cout) + b -> (..., Cout)."""
    *lead, Cin = x.shape
    Cout = w.shape[1]
    M = int(np.prod(lead)) if lead else 1
    out_dtype = x.dtype
    cd = compute_dtype or x.dtype                      # bf16 MXU operands optional
    x2 = x.reshape(M, Cin).astype(cd)
    w2 = w.astype(cd)
    b2 = (jnp.zeros((1, Cout), jnp.float32) if b is None
          else b.reshape(1, Cout).astype(jnp.float32))
    # Tile Cout: large projections (2048) get >=2 parallel grid steps (v7x 2 TCs).
    if Cout >= 512 and Cout % 256 == 0:
        tn = 256
    elif Cout >= 256 and Cout % 128 == 0:
        tn = 128
    else:
        tn = Cout
    kernel = functools.partial(_dense_kernel, act=act)
    y = pl.pallas_call(
        kernel,
        out_shape=jax.ShapeDtypeStruct((M, Cout), out_dtype),
        grid=(Cout // tn,),
        in_specs=[pl.BlockSpec((M, Cin), lambda j: (0, 0)),     # resident across grid
                  pl.BlockSpec((Cin, tn), lambda j: (0, j)),
                  pl.BlockSpec((1, tn), lambda j: (0, j))],
        out_specs=pl.BlockSpec((M, tn), lambda j: (0, j)),
        compiler_params=pltpu.CompilerParams(
            dimension_semantics=("parallel",),
            vmem_limit_bytes=_VMEM_LIMIT),
    )(x2, w2, b2)
    return y.reshape(*lead, Cout)


# ----------------------------------------------------------------------------
# Kernel 3: temporal cross-attention.  One grid step per support sample handles
# all m queries with plain 2-D MXU matmuls; output (n, m, T, C) is lane-dense.
# ----------------------------------------------------------------------------
def _attention_kernel(k_ref, q_ref, v_ref, o_ref, *, scale, m):
    k = k_ref[0]                                           # (T, Ck)
    for j in range(m):                                     # m is small & static
        q = q_ref[j]                                       # (T, Ck)
        v = v_ref[j]                                       # (T, C)
        s = jnp.dot(k, q.T, preferred_element_type=jnp.float32) * scale   # (Tx, Ty)
        s = s - jnp.max(s, axis=-1, keepdims=True)
        p = jnp.exp(s)
        p = p * pl.reciprocal(jnp.sum(p, axis=-1, keepdims=True), approx=True)
        out = jnp.dot(p.astype(v.dtype), v, preferred_element_type=jnp.float32)  # (Tx, C)
        o_ref[0, j] = out.astype(o_ref.dtype)


def attention(keys, querys, values, scale, compute_dtype=None):
    """keys (n,T,Ck), querys (m,T,Ck), values (m,T,C) -> (n, m, T, C)."""
    n, T, Ck = keys.shape
    m = querys.shape[0]
    C = values.shape[-1]
    out_dtype = values.dtype
    cd = compute_dtype or keys.dtype
    kernel = functools.partial(_attention_kernel, scale=scale, m=m)
    return pl.pallas_call(
        kernel,
        out_shape=jax.ShapeDtypeStruct((n, m, T, C), out_dtype),
        grid=(n,),
        in_specs=[pl.BlockSpec((1, T, Ck), lambda i: (i, 0, 0)),
                  pl.BlockSpec((m, T, Ck), lambda i: (0, 0, 0)),
                  pl.BlockSpec((m, T, C), lambda i: (0, 0, 0))],
        out_specs=pl.BlockSpec((1, m, T, C), lambda i: (i, 0, 0, 0)),
        compiler_params=pltpu.CompilerParams(
            dimension_semantics=("parallel",),
            vmem_limit_bytes=_VMEM_LIMIT),
    )(keys.astype(cd), querys.astype(cd), values.astype(cd))


# ----------------------------------------------------------------------------
# Kernel 4: fused gen_mask + area-normalize + mean-over-perturbations + masked
# spatial pooling.  The mask never leaves VMEM; the pooling is a per-frame
# (1, HW) @ (HW, C) MXU contraction with C on the lane axis.
# ----------------------------------------------------------------------------
def _masked_pool_kernel(base_ref, off_ref, feat_ref, o_ref, *, num_t, num_s, res):
    L = res
    offs = off_ref[0, 0]                                   # (T, S, 2) f32
    feat = feat_ref[0]                                     # (T, HW, C)
    base = base_ref[...]                                   # (2, HW): [w-grid, h-grid]
    bx = base[0:1][:, None, :]                             # (1, 1, HW)
    by = base[1:2][:, None, :]                             # (1, 1, HW)

    def line(g):
        # exact gen_mask math: strict inequalities + linear boundary margin
        full = jnp.logical_and(g > -1.0, g < 1.0).astype(jnp.float32)
        margin = jnp.maximum(
            (1.0 - full) * (1.0 - (jnp.abs(g) - 1.0) * ((L - 1) * 0.5)), 0.0)
        return full + margin

    lx = line(bx + offs[:, :, 0:1])                        # (T, S, HW)
    ly = line(by + offs[:, :, 1:2])                        # (T, S, HW)
    # Each distinct w (resp. h) value appears exactly L times along HW, so the
    # 1-D line sums are the HW sums divided by L.
    sx = jnp.sum(lx, axis=-1, keepdims=True) * (1.0 / L)   # (T, S, 1)
    sy = jnp.sum(ly, axis=-1, keepdims=True) * (1.0 / L)   # (T, S, 1)
    # 1/area; the max() guards the 0/0 case (fully out-of-frame line -> zero mask).
    inv_area = pl.reciprocal(jnp.maximum(sx * sy, 1e-20), approx=True)
    mask = jnp.sum(lx * ly * inv_area, axis=1) * (1.0 / num_s)        # (T, HW)

    # Masked spatial pooling: per-frame (1,HW)@(HW,C) matmul, lane-dense over C.
    for t in range(num_t):                                 # T is small & static
        row = jnp.dot(mask[t:t + 1, :].astype(feat.dtype), feat[t],
                      preferred_element_type=jnp.float32)  # (1, C)
        o_ref[0, 0, pl.ds(t, 1), :] = row.astype(o_ref.dtype)


def masked_pool(feat, offs):
    """feat: (N1, T, HW, C) channel-last; offs: (N1, N2, T, S, 2) -> (N1, N2, T, C)."""
    N1, T, HW, C = feat.shape
    N2, S = offs.shape[1], offs.shape[3]
    L = int(round(math.sqrt(HW)))
    assert L * L == HW, "spatial resolution must be square"
    idx = np.arange(HW)
    base = np.stack([idx % L, idx // L], 0).astype(np.float32)
    base = base / float(L - 1) * 2.0 - 1.0                 # (2, HW)
    kernel = functools.partial(_masked_pool_kernel, num_t=T, num_s=S, res=L)
    return pl.pallas_call(
        kernel,
        out_shape=jax.ShapeDtypeStruct((N1, N2, T, C), feat.dtype),
        # i outer / j inner: the feat block (indexed only by i) is reused across j.
        grid=(N1, N2),
        in_specs=[pl.BlockSpec((2, HW), lambda i, j: (0, 0)),
                  pl.BlockSpec((1, 1, T, S, 2), lambda i, j: (i, j, 0, 0, 0)),
                  pl.BlockSpec((1, T, HW, C), lambda i, j: (i, 0, 0, 0))],
        out_specs=pl.BlockSpec((1, 1, T, C), lambda i, j: (i, j, 0, 0)),
        compiler_params=pltpu.CompilerParams(
            dimension_semantics=("parallel", "parallel"),
            vmem_limit_bytes=_VMEM_LIMIT),
    )(jnp.asarray(base), offs.astype(jnp.float32), feat)


# ----------------------------------------------------------------------------
# mvnet helpers (plain XLA, channel-last; see TODO at top).
# ----------------------------------------------------------------------------
def _conv3d_cl(x, w, b):
    # x: (B, T, H, W, Ci), w: (3, 3, 3, Ci, Co)
    y = lax.conv_general_dilated(
        x, w, window_strides=(1, 1, 1),
        padding=((1, 1), (1, 1), (1, 1)),
        dimension_numbers=("NDHWC", "DHWIO", "NDHWC"))
    return y + b


def _batchnorm_cl(x, gamma, beta, mean, var, eps=1e-5):
    inv = gamma * lax.rsqrt(var + eps)
    return (x - mean) * inv + beta


def _maxpool_hw(x):
    return lax.reduce_window(x, -jnp.inf, lax.max,
                             window_dimensions=(1, 1, 2, 2, 1),
                             window_strides=(1, 1, 2, 2, 1),
                             padding="VALID")


# ----------------------------------------------------------------------------
# ACM module (JAX/Pallas port of the PyTorch forward pass).
# External interface keeps the PyTorch layout: inputs (N, C, T, H, W), outputs
# ((n, m, 2C, T, 1, 1), (n*m, T, 2)); everything internal runs channel-last.
# ----------------------------------------------------------------------------
class ACM:
    def __init__(self, T, shot=1, dim=(2048, 2048), key=None, mxu_dtype=None):
        if key is None:
            key = jax.random.PRNGKey(0)
        self.T = T
        self.shot = shot
        self.dim = dim
        # Optional bf16 storage/compute for MXU operands (f32 accumulation).
        # Set mxu_dtype=jnp.bfloat16 at production sizes (C=2048).
        self.mxu_dtype = mxu_dtype
        wdt = mxu_dtype or jnp.float32
        C, Ck = dim
        ks = jax.random.split(key, 7)

        def init(k, shape, fan_in, dt=jnp.float32):
            w = jax.random.normal(k, shape, jnp.float32) / math.sqrt(fan_in)
            return w.astype(dt)

        # 1x1 convs of the temporal-coordinate module, stored (Cin, Cout).
        self.keynet_w = init(ks[0], (C, Ck), C, wdt)
        self.querynet_w = init(ks[1], (C, Ck), C, wdt)
        self.valuenet_w = init(ks[2], (C, C), C, wdt)

        # mvnet: Conv3d(2C,128,3)-BN-MaxPool(1,2,2)-ReLU-Conv3d(128,128,3)-BN-
        #        MaxPool(1,2,2)-ReLU-AdaptiveMaxPool3d((None,1,1))-Squeeze(-2,-1)
        #        -Conv1d(128,64,1)-ReLU-Conv1d(64,2,1)-Tanh
        self.c1_w = init(ks[3], (3, 3, 3, 2 * C, 128), 2 * C * 27)
        self.c1_b = jnp.zeros((128,), jnp.float32)
        self.bn1 = dict(gamma=jnp.ones((128,), jnp.float32),
                        beta=jnp.zeros((128,), jnp.float32),
                        mean=jnp.zeros((128,), jnp.float32),
                        var=jnp.ones((128,), jnp.float32))
        self.c2_w = init(ks[4], (3, 3, 3, 128, 128), 128 * 27)
        self.c2_b = jnp.zeros((128,), jnp.float32)
        self.bn2 = dict(gamma=jnp.ones((128,), jnp.float32),
                        beta=jnp.zeros((128,), jnp.float32),
                        mean=jnp.zeros((128,), jnp.float32),
                        var=jnp.ones((128,), jnp.float32))
        self.h1_w = init(ks[5], (128, 64), 128)
        self.h1_b = init(ks[6], (64,), 128)
        # Offset head is zero-initialized in the reference module.
        self.h2_w = jnp.zeros((64, 2), jnp.float32)
        self.h2_b = jnp.zeros((2,), jnp.float32)

        delta = 0.2
        self.perturb = jnp.array(
            [[0, 0], [0, 1], [1, 0], [0, -1], [-1, 0],
             [1, 1], [-1, -1], [1, -1], [-1, 1]], jnp.float32
        ).reshape(1, 1, 9, 2) * delta

    # -- temporal coordinate (TC) module, channel-last ------------------------
    def temporal_coordinate(self, support_cl, query_cl):
        # support_cl: (n, T, HW, C), query_cl: (m, T, HW, C)
        s_mean = spatial_mean(support_cl)                              # (n, T, C)
        q_mean = spatial_mean(query_cl)                                # (m, T, C)
        cd = self.mxu_dtype
        keys = dense(s_mean, self.keynet_w, compute_dtype=cd)          # (n, T, Ck)
        querys = dense(q_mean, self.querynet_w, compute_dtype=cd)      # (m, T, Ck)
        values = dense(q_mean, self.valuenet_w, compute_dtype=cd)      # (m, T, C)
        scale = 1.0 / math.sqrt(self.dim[1])
        aligned = attention(keys, querys, values, scale, compute_dtype=cd)  # (n,m,T,C)
        query_aligned = query_cl[None] + aligned[:, :, :, None, :]     # (n,m,T,HW,C)
        support_projed = support_cl + dense(
            s_mean, self.valuenet_w, compute_dtype=cd)[:, :, None, :]  # (n,T,HW,C)
        return support_projed, query_aligned

    # -- forward ---------------------------------------------------------------
    def __call__(self, support, query):
        n, C, T, H, W = support.shape
        m = query.shape[0]
        HW = H * W
        B = n * m

        # One-time layout plumbing: channel-last so C is the 128-lane axis.
        support_cl = jnp.transpose(support, (0, 2, 3, 4, 1)).reshape(n, T, HW, C)
        query_cl = jnp.transpose(query, (0, 2, 3, 4, 1)).reshape(m, T, HW, C)

        support_projed, query_aligned = self.temporal_coordinate(support_cl, query_cl)

        # Channel-concat (support, query) pairs for the motion net.
        sup_exp = jnp.broadcast_to(support_projed[:, None], (n, m, T, HW, C))
        pairs = jnp.concatenate([sup_exp, query_aligned], axis=-1)     # (n,m,T,HW,2C)
        pairs = pairs.reshape(B, T, H, W, 2 * C)

        # ---- mvnet (offset prediction), plain XLA channel-last ----
        h = _conv3d_cl(pairs, self.c1_w, self.c1_b)
        h = _batchnorm_cl(h, **self.bn1)
        h = _maxpool_hw(h)
        h = jnp.maximum(h, 0.0)
        h = _conv3d_cl(h, self.c2_w, self.c2_b)
        h = _batchnorm_cl(h, **self.bn2)
        h = _maxpool_hw(h)
        h = jnp.maximum(h, 0.0)
        h = jnp.max(h, axis=(2, 3))                 # AdaptiveMaxPool3d((None,1,1)) + Squeeze
        h = dense(h, self.h1_w, self.h1_b, act="relu")      # (B, T, 64)
        off = dense(h, self.h2_w, self.h2_b, act="tanh")    # (B, T, 2)

        offsets = off * 0.75                                  # (B, T, 2)
        raw_offsets = offsets
        offsets = offsets[:, :, None, :] + self.perturb       # (B, T, S, 2)
        S = offsets.shape[2]

        # Support branch (+offsets): grid over (n, m) with un-expanded support.
        sup_pooled = masked_pool(support_projed,
                                 offsets.reshape(n, m, T, S, 2))        # (n, m, T, C)
        # Query branch (-offsets).
        qry_pooled = masked_pool(query_aligned.reshape(B, T, HW, C),
                                 (-offsets).reshape(B, 1, T, S, 2))
        qry_pooled = qry_pooled.reshape(n, m, T, C)

        out = jnp.concatenate([sup_pooled, qry_pooled], axis=-1)        # (n, m, T, 2C)
        out = jnp.transpose(out, (0, 1, 3, 2))[..., None, None]         # (n, m, 2C, T, 1, 1)
        return out, raw_offsets


# ----------------------------------------------------------------------------
# Pure-jnp references (correctness checks in __main__ only).
# ----------------------------------------------------------------------------
def _gen_mask_ref(offsets, L):
    shape = offsets.shape[:-1]
    off = offsets.reshape(-1, 1, 2)
    N = off.shape[0]
    g = (jnp.arange(L, dtype=jnp.float32) / (L - 1)) * 2.0 - 1.0
    g = jnp.broadcast_to(g.reshape(1, L, 1), (N, L, 2)) + off
    full = jnp.logical_and(g > -1.0, g < 1.0).astype(jnp.float32)
    margin = jax.nn.relu((1.0 - full) * (1.0 - (jnp.abs(g) - 1.0) * ((L - 1) / 2.0)))
    mxy = full + margin
    mx, my = mxy[..., 0], mxy[..., 1]
    mask = my[..., :, None] * mx[..., None, :]
    return mask.reshape(*shape, L, L)


def _masked_pool_ref(feat_cl, offs, L):
    # feat_cl: (N1, T, HW, C); offs: (N1, N2, T, S, 2)
    N1, T, HW, C = feat_cl.shape
    N2 = offs.shape[1]
    mask = _gen_mask_ref(offs, L)                            # (N1,N2,T,S,L,L)
    area = jnp.sum(mask, axis=(-1, -2), keepdims=True)
    mask = jnp.mean(mask / area, axis=3)                     # (N1,N2,T,L,L)
    mask = mask.reshape(N1, N2, T, HW)
    return jnp.einsum("nmtk,ntkc->nmtc", mask, feat_cl)


if __name__ == "__main__":
    key = jax.random.PRNGKey(0)
    k_sup, k_qry, k_mod, k_chk = jax.random.split(key, 4)

    n, m = 2, 2
    C, Ck = 16, 16
    T, H, W = 4, 8, 8
    HW = H * W

    support = jax.random.normal(k_sup, (n, C, T, H, W), jnp.float32)
    query = jax.random.normal(k_qry, (m, C, T, H, W), jnp.float32)

    acm = ACM(T, shot=1, dim=(C, Ck), key=k_mod)

    c1, c2, c3, c4, c5, c6, c7 = jax.random.split(k_chk, 7)

    # ---- spatial mean (channel-last) ----
    sup_cl = jnp.transpose(support, (0, 2, 3, 4, 1)).reshape(n, T, HW, C)
    got = spatial_mean(sup_cl)
    ref = jnp.mean(sup_cl, axis=2)
    assert jnp.allclose(got, ref, atol=1e-4, rtol=1e-4)

    # ---- 1x1 conv as batched matmul (+ bias + relu) ----
    x_t = jax.random.normal(c1, (3, 5, 8), jnp.float32)          # (B, T, Cin)
    w_t = jax.random.normal(c2, (8, 5), jnp.float32) * 0.3       # (Cin, Cout)
    b_t = jax.random.normal(c3, (5,), jnp.float32) * 0.1
    got = dense(x_t, w_t, b_t, act="relu")
    ref = jnp.maximum(jnp.einsum("btc,co->bto", x_t, w_t) + b_t, 0.0)
    assert jnp.allclose(got, ref, atol=1e-2, rtol=1e-2)
    # bf16 MXU-operand path (f32 accumulation)
    got_bf16 = dense(x_t, w_t, b_t, act="relu", compute_dtype=jnp.bfloat16)
    assert jnp.allclose(got_bf16, ref, atol=5e-2, rtol=5e-2)

    # ---- attention ----
    kk = jax.random.normal(c4, (n, T, Ck), jnp.float32)
    qq = jax.random.normal(c5, (m, T, Ck), jnp.float32)
    vv = jax.random.normal(c6, (m, T, C), jnp.float32)
    scale = 1.0 / math.sqrt(Ck)
    got = attention(kk, qq, vv, scale)
    att = jax.nn.softmax(jnp.einsum("nxc,myc->nmxy", kk, qq) * scale, axis=-1)
    ref = jnp.einsum("nmxy,myc->nmxc", att, vv)
    assert jnp.allclose(got, ref, atol=2e-2, rtol=2e-2)

    # ---- fused masked pooling vs gen_mask reference ----
    offs_t = jax.random.uniform(c7, (n, m, T, 9, 2), jnp.float32,
                                minval=-0.8, maxval=0.8)
    got = masked_pool(sup_cl, offs_t)
    ref = _masked_pool_ref(sup_cl, offs_t, H)
    assert jnp.allclose(got, ref, atol=1e-2, rtol=1e-2)

    # ---- full forward pass ----
    pairs, raw_offsets = acm(support, query)
    pairs = jax.block_until_ready(pairs)
    raw_offsets = jax.block_until_ready(raw_offsets)

    assert pairs.shape == (n, m, 2 * C, T, 1, 1), pairs.shape
    assert raw_offsets.shape == (n * m, T, 2), raw_offsets.shape
    assert bool(jnp.all(jnp.isfinite(pairs)))
    # the offset head is zero-initialized (as in the PyTorch module):
    assert bool(jnp.all(raw_offsets == 0.0))

    print("KERNEL_OK")
</pallas_src>

<mosaic_0001>
module attributes {stable_mosaic.version = 11 : i64} {
  func.func @_spatial_mean_kernel(%arg0: i32, %arg1: memref<1x4x64x16xf32, #tpu.memory_space<vmem>>, %arg2: memref<1x4x16xf32, #tpu.memory_space<vmem>>) attributes {dimension_semantics = [#tpu.dimension_semantics<parallel>], iteration_bounds = array<i64: 2>, scalar_prefetch = 0 : i64, scratch_operands = 0 : i64, tpu.core_type = #tpu.core_type<tc>, window_params = [{transform_indices = @transform_0, window_bounds = array<i64: 1, 4, 64, 16>}, {transform_indices = @transform_1, window_bounds = array<i64: 1, 4, 16>}]} {
    %c0 = arith.constant 0 : index
    %c0_0 = arith.constant 0 : index
    %c0_1 = arith.constant 0 : index
    %c0_2 = arith.constant 0 : index
    %0 = vector.load %arg1[%c0, %c0_0, %c0_1, %c0_2] : memref<1x4x64x16xf32, #tpu.memory_space<vmem>>, vector<1x4x64x16xf32>
    %1 = vector.shape_cast %0 : vector<1x4x64x16xf32> to vector<4x64x16xf32>
    %cst = arith.constant dense<0.000000e+00> : vector<4x16xf32>
    %2 = vector.multi_reduction <add>, %1, %cst [1] : vector<4x64x16xf32> to vector<4x16xf32>
    %cst_3 = arith.constant 6.400000e+01 : f32
    %3 = vector.broadcast %cst_3 : f32 to vector<4x16xf32>
    %4 = arith.divf %2, %3 : vector<4x16xf32>
    %5 = vector.shape_cast %4 : vector<4x16xf32> to vector<1x4x16xf32>
    %c0_4 = arith.constant 0 : index
    %c0_5 = arith.constant 0 : index
    %c0_6 = arith.constant 0 : index
    %6 = vector.load %arg2[%c0_4, %c0_5, %c0_6] : memref<1x4x16xf32, #tpu.memory_space<vmem>>, vector<1x4x16xf32>
    tpu.vector_store %arg2[%c0_4, %c0_5, %c0_6], %5 {strides = array<i32>} : memref<1x4x16xf32, #tpu.memory_space<vmem>>, vector<1x4x16xf32>,
    return
  }
  func.func @transform_0(%arg0: i32) -> (i32, i32, i32, i32) {
    %c0_i32 = arith.constant 0 : i32
    %c0_i32_0 = arith.constant 0 : i32
    %c0_i32_1 = arith.constant 0 : i32
    %c0_i32_2 = arith.constant 0 : i32
    return %arg0, %c0_i32, %c0_i32_0, %c0_i32_1 : i32, i32, i32, i32
  }
  func.func @transform_1(%arg0: i32) -> (i32, i32, i32) {
    %c0_i32 = arith.constant 0 : i32
    %c0_i32_0 = arith.constant 0 : i32
    %c0_i32_1 = arith.constant 0 : i32
    return %arg0, %c0_i32, %c0_i32_0 : i32, i32, i32
  }
}

</mosaic_0001>

<llo_original>
// kernel: tpu_custom_call.1
$region0: #{tpu_custom_call.1}
  #allocation0 [shape = 'u32[]', space=smem, size = 0x4, offset = 0x4, fixed_abs, tag = 'smem constant byte address 0x4 - core index']
  #allocation1 [shape = 'u32[144,128]{1,0:T(1,128)}', space=vmem, size = 0x12000, scoped, tag = 'internal scratch']
  %s0 = inlined_call_operand.vmem [shape: f32[2,4,64,16], index: 0, kind: input, shape index: {}]
  %s1 = inlined_call_operand.hbm [shape: f32[2,4,16], index: 1, kind: output, shape index: {}]
  %s2 = sld [smem:[#allocation0]]
  $region37: #{tpu_custom_call.1} parent=0
    _
  %s4 = ssub.s32 1, %s2
  %s5 = scalar_select 0, %s4, %s2
  $region1: #{tpu_custom_call.1} parent=0
    #allocation2 [shape = 'u8[4096]{0}', space=vmem, size = 0x1000, scoped, tag = 'output window, operand 0']
    #allocation3 [shape = 's32[2]{0}', space=sflag, size = 0x8, scoped, tag = 'scoped memory for tpu_custom_call.1']
    %6 = vsyncpa [#allocation3], 0
    %s7 = scalar_lea.sflag [#allocation3], 1
    %8 = vsyncpa %s7, 0
    loop: start=0, step=1, limit=4
    $region2: #{tpu_custom_call.1} parent=1 // loop_pre_header
      _
    $region3: #{tpu_custom_call.1} parent=1 // loop_header
      %s10 = sphi 0, %s14
      %p11 = scmp.ge.s32.totalorder %s10, 4
      %s20 = sphi 0, %s22
      %s23 = sphi 0, %s20
      %s24 = sphi 0, %s23
      %s40 = sphi 0, %s24
      %s46 = sphi 0, %s48
      %s49 = sphi 0, %s46
      %s50 = sphi 0, %s49
      %s66 = sphi 0, %s50
    $region4: #{tpu_custom_call.1} parent=1 // loop_header_branch
      %13 = sbr.rel (%p11) target = $region8
    $region5: #{tpu_custom_call.1} parent=1 // loop_body
      %s15 = ssub.s32 %s10, 1
      %s16 = ssub.s32 %s10, 2
      %s17 = sadd.s32 %s10, 1
      %s18 = ssub.s32 %s10, %s17
      %p19 = scmp.eq.s32.totalorder %s18, 0
      %s21 = sadd.s32 %s20, 1
      %s22 = scalar_select %p19, %s20, %s21
      %p25 = pneg %p19
      %p26 = scmp.eq.s32.totalorder %s10, 1
      %p27 = por %p25, %p26
      %p28 = scmp.ne.s32.totalorder %s20, %s23
      %p29 = scmp.eq.s32.totalorder %s10, 0
      %p30 = por %p28, %p29
      %p31 = scmp.ne.s32.totalorder %s20, %s23
      %p32 = scmp.eq.s32.totalorder %s15, 1
      %p33 = por %p31, %p32
      %p34 = scmp.ne.s32.totalorder %s23, %s24
      %p35 = scmp.eq.s32.totalorder %s15, 0
      %p36 = por %p34, %p35
      %p37 = scmp.ne.s32.totalorder %s23, %s24
      %p38 = scmp.eq.s32.totalorder %s16, 1
      %p39 = por %p37, %p38
      %p41 = scmp.ne.s32.totalorder %s24, %s40
      %p42 = scmp.eq.s32.totalorder %s16, 0
      %p43 = por %p41, %p42
      %s44 = ssub.s32 %s10, %s17
      %p45 = scmp.eq.s32.totalorder %s44, 0
      %s47 = sadd.s32 %s46, 1
      %s48 = scalar_select %p45, %s46, %s47
      %p51 = pneg %p45
      %p52 = scmp.eq.s32.totalorder %s10, 1
      %p53 = por %p51, %p52
      %p54 = scmp.ne.s32.totalorder %s46, %s49
      %p55 = scmp.eq.s32.totalorder %s10, 0
      %p56 = por %p54, %p55
      %p57 = scmp.ne.s32.totalorder %s46, %s49
      %p58 = scmp.eq.s32.totalorder %s15, 1
      %p59 = por %p57, %p58
      %p60 = scmp.ne.s32.totalorder %s49, %s50
      %p61 = scmp.eq.s32.totalorder %s15, 0
      %p62 = por %p60, %p61
      %p63 = scmp.ne.s32.totalorder %s49, %s50
      %p64 = scmp.eq.s32.totalorder %s16, 1
      %p65 = por %p63, %p64
      %p67 = scmp.ne.s32.totalorder %s50, %s66
      %p68 = scmp.eq.s32.totalorder %s16, 0
      %p69 = por %p67, %p68
      %p70 = scmp.le.s32.totalorder 1, %s10
      %p71 = scmp.lt.s32.totalorder %s10, 3
      %p72 = pnand %p70, %p71
      %p73 = pneg %p72
      // Predicated region
      $region9: #{tpu_custom_call.1} parent=5 // pred_check
        _
      $region10: #{tpu_custom_call.1} parent=5 // pred_check_branch
        %75 = sbr.rel (%p72) target = $region12
      $region11: #{tpu_custom_call.1} parent=5 // pred_region
        %s76 = ssub.s32 %s10, 1
      $region12: #{tpu_custom_call.1} parent=5 // pred_fallthru
        _
      %p77 = scmp.lt.s32.totalorder %s10, 2
      // Predicated region
      $region13: #{tpu_custom_call.1} parent=5 // pred_check
        %p78 = pneg %p77
      $region14: #{tpu_custom_call.1} parent=5 // pred_check_branch
        %80 = sbr.rel (%p78) target = $region16
      $region15: #{tpu_custom_call.1} parent=5 // pred_region
        // Predicated region
        $region17: #{tpu_custom_call.1} parent=15 // pred_check
          %p81 = pneg %p30
        $region18: #{tpu_custom_call.1} parent=15 // pred_check_branch
          %83 = sbr.rel (%p81) target = $region20
        $region19: #{tpu_custom_call.1} parent=15 // pred_region
          %p84 = scmp.lt.s32.totalorder %s10, 1
          %s85 = scalar_select %p84, %s10, 1
          %s86 = smul.addr %s85, 32
          %s87 = smul.addr %s86, 8
          %s88 = scalar_lea.vmem %s0, %s87
        $region20: #{tpu_custom_call.1} parent=15 // pred_fallthru
          _
      $region16: #{tpu_custom_call.1} parent=5 // pred_fallthru
        _
      %p89 = scmp.le.s32.totalorder 1, %s10
      %p90 = scmp.lt.s32.totalorder %s10, 3
      %p91 = pnand %p89, %p90
      %p92 = pneg %p91
      // Predicated region
      $region21: #{tpu_custom_call.1} parent=5 // pred_check
        _
      $region22: #{tpu_custom_call.1} parent=5 // pred_check_branch
        %94 = sbr.rel (%p91) target = $region24
      $region23: #{tpu_custom_call.1} parent=5 // pred_region
        %s95 = ssub.s32 %s10, 1
        %p96 = scmp.lt.s32.totalorder %s15, 1
        %s97 = scalar_select %p96, %s15, 1
        %s98 = smul.addr %s97, 32
        %s99 = smul.addr %s98, 8
        %s100 = scalar_lea.vmem %s0, %s99
        %p101 = pneg %p36
        %p102 = pneg %p33
        %p103 = pneg %p62
        %p104 = pneg %p59
        %s105 = sand.u32 %s49, 1
        %s106 = scalar_lea.sflag [#allocation3], %s105
        %s107 = sand.u32 %s49, 1
        %s108 = smul.addr %s107, 4
        %s109 = scalar_lea.vmem [#allocation2], %s108
        %p110 = scmp.lt.s32.totalorder %s15, 1
        %s111 = scalar_select %p110, %s15, 1
        %s112 = smul.addr %s111, 32
        %s113 = smul.addr %s112, 8
        %s114 = scalar_lea.vmem %s0, %s113
        %v115 = vld [vmem:[%s114] sm:$0xff]
        %v116 = vld [vmem:[%s114 + $0x8] sm:$0xff]
        %v117 = vld [vmem:[%s114 + $0x10] sm:$0xff]
        %v118 = vld [vmem:[%s114 + $0x18] sm:$0xff]
        %v119 = vld [vmem:[%s114 + $0x20] sm:$0xff]
        %v120 = vld [vmem:[%s114 + $0x28] sm:$0xff]
        %v121 = vld [vmem:[%s114 + $0x30] sm:$0xff]
        %v122 = vld [vmem:[%s114 + $0x38] sm:$0xff]
        %v123 = vld [vmem:[%s114 + $0x40] sm:$0xff]
        %v124 = vld [vmem:[%s114 + $0x48] sm:$0xff]
        %v125 = vld [vmem:[%s114 + $0x50] sm:$0xff]
        %v126 = vld [vmem:[%s114 + $0x58] sm:$0xff]
        %v127 = vld [vmem:[%s114 + $0x60] sm:$0xff]
        %v128 = vld [vmem:[%s114 + $0x68] sm:$0xff]
        %v129 = vld [vmem:[%s114 + $0x70] sm:$0xff]
        %v130 = vld [vmem:[%s114 + $0x78] sm:$0xff]
        %v131 = vld [vmem:[%s114 + $0x80] sm:$0xff]
        %v132 = vld [vmem:[%s114 + $0x88] sm:$0xff]
        %v133 = vld [vmem:[%s114 + $0x90] sm:$0xff]
        %v134 = vld [vmem:[%s114 + $0x98] sm:$0xff]
        %v135 = vld [vmem:[%s114 + $0xa0] sm:$0xff]
        %v136 = vld [vmem:[%s114 + $0xa8] sm:$0xff]
        %v137 = vld [vmem:[%s114 + $0xb0] sm:$0xff]
        %v138 = vld [vmem:[%s114 + $0xb8] sm:$0xff]
        %v139 = vld [vmem:[%s114 + $0xc0] sm:$0xff]
        %v140 = vld [vmem:[%s114 + $0xc8] sm:$0xff]
        %v141 = vld [vmem:[%s114 + $0xd0] sm:$0xff]
        %v142 = vld [vmem:[%s114 + $0xd8] sm:$0xff]
        %v143 = vld [vmem:[%s114 + $0xe0] sm:$0xff]
        %v144 = vld [vmem:[%s114 + $0xe8] sm:$0xff]
        %v145 = vld [vmem:[%s114 + $0xf0] sm:$0xff]
        %v146 = vld [vmem:[%s114 + $0xf8] sm:$0xff]
        %vm147 = vcmask 130048
        %v148 = vsel %vm147, %v115, 0.0
        %v149 = vsel %vm147, %v116, 0.0
        %v150 = vadd.f32 %v148, %v149
        %v151 = vsel %vm147, %v117, 0.0
        %v152 = vadd.f32 %v150, %v151
        %v153 = vsel %vm147, %v118, 0.0
        %v154 = vadd.f32 %v152, %v153
        %v155 = vsel %vm147, %v119, 0.0
        %v156 = vadd.f32 %v154, %v155
        %v157 = vsel %vm147, %v120, 0.0
        %v158 = vadd.f32 %v156, %v157
        %v159 = vsel %vm147, %v121, 0.0
        %v160 = vadd.f32 %v158, %v159
        %v161 = vsel %vm147, %v122, 0.0
        %v162 = vadd.f32 %v160, %v161
        %v163 = vrot.slane %v162, 4
        %v164 = vadd.f32 %v162, %v163
        %v165 = vrot.slane %v164, 2
        %v166 = vadd.f32 %v164, %v165
        %v167 = vrot.slane %v166, 1
        %v168 = vadd.f32 %v166, %v167
        %v169 = vsel %vm147, %v123, 0.0
        %v170 = vsel %vm147, %v124, 0.0
        %v171 = vadd.f32 %v169, %v170
        %v172 = vsel %vm147, %v125, 0.0
        %v173 = vadd.f32 %v171, %v172
        %v174 = vsel %vm147, %v126, 0.0
        %v175 = vadd.f32 %v173, %v174
        %v176 = vsel %vm147, %v127, 0.0
        %v177 = vadd.f32 %v175, %v176
        %v178 = vsel %vm147, %v128, 0.0
        %v179 = vadd.f32 %v177, %v178
        %v180 = vsel %vm147, %v129, 0.0
        %v181 = vadd.f32 %v179, %v180
        %v182 = vsel %vm147, %v130, 0.0
        %v183 = vadd.f32 %v181, %v182
        %v184 = vrot.slane %v183, 4
        %v185 = vadd.f32 %v183, %v184
        %v186 = vrot.slane %v185, 2
        %v187 = vadd.f32 %v185, %v186
        %v188 = vrot.slane %v187, 1
        %v189 = vadd.f32 %v187, %v188
        %v190 = vsel %vm147, %v131, 0.0
        %v191 = vsel %vm147, %v132, 0.0
        %v192 = vadd.f32 %v190, %v191
        %v193 = vsel %vm147, %v133, 0.0
        %v194 = vadd.f32 %v192, %v193
        %v195 = vsel %vm147, %v134, 0.0
        %v196 = vadd.f32 %v194, %v195
        %v197 = vsel %vm147, %v135, 0.0
        %v198 = vadd.f32 %v196, %v197
        %v199 = vsel %vm147, %v136, 0.0
        %v200 = vadd.f32 %v198, %v199
        %v201 = vsel %vm147, %v137, 0.0
        %v202 = vadd.f32 %v200, %v201
        %v203 = vsel %vm147, %v138, 0.0
        %v204 = vadd.f32 %v202, %v203
        %v205 = vrot.slane %v204, 4
        %v206 = vadd.f32 %v204, %v205
        %v207 = vrot.slane %v206, 2
        %v208 = vadd.f32 %v206, %v207
        %v209 = vrot.slane %v208, 1
        %v210 = vadd.f32 %v208, %v209
        %v211 = vsel %vm147, %v139, 0.0
        %v212 = vsel %vm147, %v140, 0.0
        %v213 = vadd.f32 %v211, %v212
        %v214 = vsel %vm147, %v141, 0.0
        %v215 = vadd.f32 %v213, %v214
        %v216 = vsel %vm147, %v142, 0.0
        %v217 = vadd.f32 %v215, %v216
        %v218 = vsel %vm147, %v143, 0.0
        %v219 = vadd.f32 %v217, %v218
        %v220 = vsel %vm147, %v144, 0.0
        %v221 = vadd.f32 %v219, %v220
        %v222 = vsel %vm147, %v145, 0.0
        %v223 = vadd.f32 %v221, %v222
        %v224 = vsel %vm147, %v146, 0.0
        %v225 = vadd.f32 %v223, %v224
        %v226 = vrot.slane %v225, 4
        %v227 = vadd.f32 %v225, %v226
        %v228 = vrot.slane %v227, 2
        %v229 = vadd.f32 %v227, %v228
        %v230 = vrot.slane %v229, 1
        %v231 = vadd.f32 %v229, %v230
        %v232 = vrcp.pop 64.0
        %v233 = vmul.f32 %v168, %v232
        %v234 = vmul.f32 %v189, %v232
        %v235 = vmul.f32 %v210, %v232
        %v236 = vmul.f32 %v231, %v232
        %vm241 = vcmask 1041409
        %v242 = vsel %vm241, %v234, %v233
        %vm243 = vcmask 1042434
        %v244 = vsel %vm243, %v235, %v242
        %vm245 = vcmask 1043459
        %v246 = vsel %vm245, %v236, %v244
        %vm248 = vcmask 125952
        %249 = vst.msk [vmem:[%s109] sm:$0xf] %vm248, %v246
        %s250 = sand.u32 %s49, 1
        %s251 = scalar_lea.sflag [#allocation3], %s250
        %s252 = sand.u32 %s49, 1
        %s253 = smul.addr %s252, 4
        %s254 = scalar_lea.vmem [#allocation2], %s253
        // Predicated region
        $region25: #{tpu_custom_call.1} parent=23 // pred_check
          %p255 = pneg %p59
        $region26: #{tpu_custom_call.1} parent=23 // pred_check_branch
          %257 = sbr.rel (%p255) target = $region28
        $region27: #{tpu_custom_call.1} parent=23 // pred_region
          %s259 = ssub.s32 64, 64
          %260 = vsyncadd %s251, %s259
          %s261 = smul.addr %s15, 64
          %s262 = scalar_lea.hbm %s1, %s261
          %s264 = sshll.u32 %s254, 4
          %s265 = int_to_ptr.vmem [resolvable:$true] %s264
          %267 = dma.vmem_to_hbm [thread:$0]  %s265, 64, %s262, %s251
        $region28: #{tpu_custom_call.1} parent=23 // pred_fallthru
          _
      $region24: #{tpu_custom_call.1} parent=5 // pred_fallthru
        _
      %p268 = scmp.le.s32.totalorder 2, %s10
      // Predicated region
      $region29: #{tpu_custom_call.1} parent=5 // pred_check
        %p269 = pneg %p268
      $region30: #{tpu_custom_call.1} parent=5 // pred_check_branch
        %271 = sbr.rel (%p269) target = $region32
      $region31: #{tpu_custom_call.1} parent=5 // pred_region
        %s272 = ssub.s32 %s10, 2
        // Predicated region
        $region33: #{tpu_custom_call.1} parent=31 // pred_check
          %p273 = pneg %p65
        $region34: #{tpu_custom_call.1} parent=31 // pred_check_branch
          %275 = sbr.rel (%p273) target = $region36
        $region35: #{tpu_custom_call.1} parent=31 // pred_region
          %s276 = sand.u32 %s50, 1
          %s277 = scalar_lea.sflag [#allocation3], %s276
          %s278 = sand.u32 %s50, 1
          %s279 = smul.addr %s278, 4
          %s280 = scalar_lea.vmem [#allocation2], %s279
          %281 = dma.done %s277, 64
        $region36: #{tpu_custom_call.1} parent=31 // pred_fallthru
          _
      $region32: #{tpu_custom_call.1} parent=5 // pred_fallthru
        _
    $region6: #{tpu_custom_call.1} parent=1 // loop_footer
      %s14 = sadd.s32 1, %s10
    $region7: #{tpu_custom_call.1} parent=1 // loop_footer_branch
      %9 = sbr.rel target = $region3
    $region8: #{tpu_custom_call.1} parent=1 // loop_exit
      _
    %282 = vsyncpa [#allocation3], 1
    %s283 = scalar_lea.sflag [#allocation3], 1
    %284 = vsyncpa %s283, 1

</llo_original>
